<compile_context>
chip_gen: v6e
topology: v6e:2x2x1
jax: 0.10.0
libtpu: 0.0.40
codegen_flags: <defaults>
</compile_context>

<pallas_src>
import functools

import jax
import jax.numpy as jnp
from jax.experimental import pallas as pl
from jax.experimental.pallas import tpu as pltpu


def fused_gcn_stack_kernel(h_ref, adj_ref, w_ref, gbias_ref, alpha_ref, rng_ref,
                           o_ref, *, num_layers, keep_threshold, inv_keep,
                           use_prng):
    """Whole Mp_encoder forward in one invocation; the layer loop is unrolled."""
    if use_prng:
        pltpu.prng_seed(rng_ref[0])        # one hardware-PRNG seed for all layers

    # bf16 carry for the MXU; the layer-0 input is h itself.
    z = h_ref[...].astype(jnp.bfloat16)
    scale = jnp.float32(inv_keep)

    for l in range(num_layers):            # static unroll: L is a small config int
        # Linear: seq_fts = z @ W_l^T  (fc.bias == 0.0 by reference init -> omitted)
        seq_fts = jnp.dot(z, w_ref[l], preferred_element_type=jnp.float32)

        # "spmm": out = adj @ seq_fts + gcn_bias — kept fully f32 (adj is f32 and
        # seq_fts is the f32 accumulator) to avoid bf16 double rounding.
        out = jnp.dot(adj_ref[...], seq_fts, preferred_element_type=jnp.float32)
        out = out + gbias_ref[l]

        # Fused dropout(p) + PReLU epilogue:
        #   factor = keep ? (out > 0 ? 1/(1-p) : alpha/(1-p)) : 0
        if use_prng:
            raw = pltpu.prng_random_bits(out.shape)                 # fresh bits per layer
            rnd = pltpu.bitcast(raw, jnp.int32) & jnp.int32(0x00FFFFFF)
        else:
            rnd = rng_ref[l]                                        # precomputed 24-bit ints
        keep = rnd >= keep_threshold                                # P(keep) = 1 - p
        alpha = alpha_ref[l]                                        # per-layer PReLU alpha (SMEM)
        factor = jnp.where(keep,
                           jnp.where(out > 0.0, scale, scale * alpha),
                           jnp.float32(0.0))
        act = out * factor

        if l == num_layers - 1:
            o_ref[...] = act               # single f32 writeback at the end
        else:
            z = act.astype(jnp.bfloat16)   # bf16 carry into the next layer's MXU


def init_mp_encoder_params(key, hidden_dim, mp_ngcn):
    """Deterministic parameter init mirroring GCN.__init__ / weights_init."""
    params = []
    gain = 1.414
    # xavier_normal_: std = gain * sqrt(2 / (fan_in + fan_out))
    std = gain * (2.0 / (hidden_dim + hidden_dim)) ** 0.5
    for _ in range(mp_ngcn):
        key, sub = jax.random.split(key)
        w = jax.random.normal(sub, (hidden_dim, hidden_dim), jnp.float32) * std  # fc.weight
        params.append({
            "w_t": w.T,                                               # pre-transposed for h @ W^T
            # fc.bias is filled with 0.0 by the reference init -> not materialized.
            "g_bias": jnp.full((1, hidden_dim), 0.001, jnp.float32),  # GCN.bias.fill_(0.001)
            "alpha": jnp.full((), 0.25, jnp.float32),                 # PReLU default init
        })
    # NOTE: Mp_encoder.fc / feat_drop / attn_drop are defined but unused in forward.
    return params


def mp_encoder_forward(h, mps, mp_edge, params, *, dropout_p=0.9, rng_key=None):
    """Mp_encoder.forward: embeds[-1] after mp_ngcn GCN layers on adj = mps[1]."""
    del mp_edge  # unused by the reference forward
    if rng_key is None:
        rng_key = jax.random.PRNGKey(0)

    adj = mps[1].astype(jnp.float32)       # f32 adjacency (only N^2 * 4 B)
    L = len(params)
    N, D = h.shape

    # Stack per-layer parameters; the whole layer loop runs inside ONE kernel.
    w_stack = jnp.stack([p["w_t"] for p in params]).astype(jnp.bfloat16)  # (L, D, D) bf16
    gb_stack = jnp.stack([p["g_bias"] for p in params]).reshape(L, 1, D)  # (L, 1, D) f32
    alpha_vec = jnp.stack([p["alpha"].reshape(()) for p in params])       # (L,)

    keep_threshold = int(round(dropout_p * float(1 << 24)))
    inv_keep = 1.0 / (1.0 - dropout_p)

    on_tpu = jax.default_backend() == "tpu"
    if on_tpu:
        # In-kernel PRNG: ship one 32-bit seed instead of an (L, N, D) bits tensor.
        rng_arg = jax.random.randint(rng_key, (1,), 0, jnp.iinfo(jnp.int32).max,
                                     dtype=jnp.int32)
        rng_spec = pl.BlockSpec(memory_space=pltpu.MemorySpace.SMEM)
    else:
        # Interpret/CPU fallback only: host-side bits (pltpu.prng_* does not lower
        # in interpret mode).  RNG stream differs from torch either way.
        bits = jax.random.bits(rng_key, (L, N, D), dtype=jnp.uint32)
        rng_arg = (bits >> 8).astype(jnp.int32)
        rng_spec = pl.BlockSpec(memory_space=pltpu.MemorySpace.VMEM)

    kernel = functools.partial(fused_gcn_stack_kernel, num_layers=L,
                               keep_threshold=keep_threshold,
                               inv_keep=inv_keep, use_prng=on_tpu)

    vmem = pl.BlockSpec(memory_space=pltpu.MemorySpace.VMEM)
    smem = pl.BlockSpec(memory_space=pltpu.MemorySpace.SMEM)

    call = pl.pallas_call(
        kernel,
        out_shape=jax.ShapeDtypeStruct((N, D), jnp.float32),
        in_specs=[vmem, vmem, vmem, vmem, smem, rng_spec],
        out_specs=vmem,
        # Explicit scoped-VMEM budget so the fully-resident layout also survives
        # v7x (64 MiB physical / 32 MiB default scoped); v5e/v6e have headroom.
        compiler_params=pltpu.CompilerParams(vmem_limit_bytes=48 * 1024 * 1024),
    )
    args = (h.astype(jnp.float32), adj, w_stack, gb_stack, alpha_vec, rng_arg)

    # TODO(synk): for non-toy graphs (N >~ 4k on v7x, ~8k on v6e) switch to a
    # row-tiled grid (rows marked "parallel" to use v7x's second TensorCore) with
    # lane-dense (multiple-of-128) adj column tiles and an f32 accumulator,
    # instead of the fully-resident single-block layout used here.
    if on_tpu:
        return call(*args)
    with pltpu.force_tpu_interpret_mode():
        return call(*args)


if __name__ == "__main__":
    N = 16            # number of nodes
    hidden_dim = 128  # feature dim (lane-aligned)
    mp_ngcn = 2
    P = 2

    key = jax.random.PRNGKey(0)
    k_h, k_a0, k_a1, k_p, k_drop = jax.random.split(key, 5)

    h = jax.random.normal(k_h, (N, hidden_dim), jnp.float32)

    # Dense "sparse" adjacencies (row-normalized); mps is a list of length P.
    def make_adj(k):
        a = (jax.random.uniform(k, (N, N)) > 0.7).astype(jnp.float32)
        a = a + jnp.eye(N, dtype=jnp.float32)
        return a / jnp.sum(a, axis=1, keepdims=True)

    mps = [make_adj(k_a0), make_adj(k_a1)]
    mp_edge = None  # unused in forward

    params = init_mp_encoder_params(k_p, hidden_dim, mp_ngcn)

    z_mp = mp_encoder_forward(h, mps, mp_edge, params, rng_key=k_drop)
    jax.block_until_ready(z_mp)

    assert z_mp.shape == (N, hidden_dim)
    assert z_mp.dtype == jnp.float32
    assert bool(jnp.all(jnp.isfinite(z_mp)))
    print("KERNEL_OK")
</pallas_src>

<mosaic_0001>
module attributes {stable_mosaic.version = 11 : i64} {
  func.func @fused_gcn_stack_kernel(%arg0: memref<16x128xf32, #tpu.memory_space<vmem>>, %arg1: memref<16x16xf32, #tpu.memory_space<vmem>>, %arg2: memref<2x128x128xbf16, #tpu.memory_space<vmem>>, %arg3: memref<2x1x128xf32, #tpu.memory_space<vmem>>, %arg4: memref<2xf32, #tpu.memory_space<smem>>, %arg5: memref<2x16x128xi32, #tpu.memory_space<vmem>>, %arg6: memref<16x128xf32, #tpu.memory_space<vmem>>) attributes {dimension_semantics = [], scalar_prefetch = 0 : i64, scratch_operands = 0 : i64, tpu.core_type = #tpu.core_type<tc>} {
    %c0 = arith.constant 0 : index
    %c0_0 = arith.constant 0 : index
    %0 = vector.load %arg0[%c0, %c0_0] : memref<16x128xf32, #tpu.memory_space<vmem>>, vector<16x128xf32>
    %1 = arith.truncf %0 : vector<16x128xf32> to vector<16x128xbf16>
    %c0_1 = arith.constant 0 : index
    %c0_2 = arith.constant 0 : index
    %c0_3 = arith.constant 0 : index
    %2 = vector.load %arg2[%c0_1, %c0_2, %c0_3] : memref<2x128x128xbf16, #tpu.memory_space<vmem>>, vector<1x128x128xbf16>
    %3 = vector.shape_cast %2 : vector<1x128x128xbf16> to vector<128x128xbf16>
    %cst = arith.constant dense<0.000000e+00> : vector<16x128xf32>
    %4 = tpu.matmul %1, %3, %cst {dimension_numbers = #tpu.dot_dimension_numbers<[1], [0], [0], [1], [0, 0, 1, 1], [], []>} : vector<16x128xbf16>, vector<128x128xbf16>, vector<16x128xf32> -> vector<16x128xf32>
    %c0_4 = arith.constant 0 : index
    %c0_5 = arith.constant 0 : index
    %5 = vector.load %arg1[%c0_4, %c0_5] : memref<16x16xf32, #tpu.memory_space<vmem>>, vector<16x16xf32>
    %cst_6 = arith.constant dense<0.000000e+00> : vector<16x128xf32>
    %6 = tpu.matmul %5, %4, %cst_6 {dimension_numbers = #tpu.dot_dimension_numbers<[1], [0], [0], [1], [0, 0, 1, 1], [], []>} : vector<16x16xf32>, vector<16x128xf32>, vector<16x128xf32> -> vector<16x128xf32>
    %c0_7 = arith.constant 0 : index
    %c0_8 = arith.constant 0 : index
    %c0_9 = arith.constant 0 : index
    %7 = vector.load %arg3[%c0_7, %c0_8, %c0_9] : memref<2x1x128xf32, #tpu.memory_space<vmem>>, vector<1x1x128xf32>
    %8 = vector.shape_cast %7 : vector<1x1x128xf32> to vector<1x128xf32>
    %9 = vector.broadcast %8 : vector<1x128xf32> to vector<16x128xf32>
    %10 = arith.addf %6, %9 : vector<16x128xf32>
    %c0_10 = arith.constant 0 : index
    %c0_11 = arith.constant 0 : index
    %c0_12 = arith.constant 0 : index
    %11 = vector.load %arg5[%c0_10, %c0_11, %c0_12] : memref<2x16x128xi32, #tpu.memory_space<vmem>>, vector<1x16x128xi32>
    %12 = vector.shape_cast %11 : vector<1x16x128xi32> to vector<16x128xi32>
    %c15099494_i32 = arith.constant 15099494 : i32
    %13 = vector.broadcast %c15099494_i32 : i32 to vector<16x128xi32>
    %14 = arith.cmpi sge, %12, %13 : vector<16x128xi32>
    %c0_13 = arith.constant 0 : index
    %15 = memref.load %arg4[%c0_13] : memref<2xf32, #tpu.memory_space<smem>>
    %cst_14 = arith.constant 0.000000e+00 : f32
    %16 = vector.broadcast %cst_14 : f32 to vector<16x128xf32>
    %17 = arith.cmpf ogt, %10, %16 : vector<16x128xf32>
    %cst_15 = arith.constant 1.000000e+01 : f32
    %18 = arith.mulf %cst_15, %15 : f32
    %cst_16 = arith.constant 1.000000e+01 : f32
    %19 = vector.broadcast %cst_16 : f32 to vector<16x128xf32>
    %20 = vector.broadcast %18 : f32 to vector<16x128xf32>
    %21 = arith.select %17, %19, %20 : vector<16x128xi1>, vector<16x128xf32>
    %cst_17 = arith.constant 0.000000e+00 : f32
    %22 = vector.broadcast %cst_17 : f32 to vector<16x128xf32>
    %23 = arith.select %14, %21, %22 : vector<16x128xi1>, vector<16x128xf32>
    %24 = arith.mulf %10, %23 : vector<16x128xf32>
    %25 = arith.truncf %24 : vector<16x128xf32> to vector<16x128xbf16>
    %c1 = arith.constant 1 : index
    %c0_18 = arith.constant 0 : index
    %c0_19 = arith.constant 0 : index
    %26 = vector.load %arg2[%c1, %c0_18, %c0_19] : memref<2x128x128xbf16, #tpu.memory_space<vmem>>, vector<1x128x128xbf16>
    %27 = vector.shape_cast %26 : vector<1x128x128xbf16> to vector<128x128xbf16>
    %cst_20 = arith.constant dense<0.000000e+00> : vector<16x128xf32>
    %28 = tpu.matmul %25, %27, %cst_20 {dimension_numbers = #tpu.dot_dimension_numbers<[1], [0], [0], [1], [0, 0, 1, 1], [], []>} : vector<16x128xbf16>, vector<128x128xbf16>, vector<16x128xf32> -> vector<16x128xf32>
    %c0_21 = arith.constant 0 : index
    %c0_22 = arith.constant 0 : index
    %29 = vector.load %arg1[%c0_21, %c0_22] : memref<16x16xf32, #tpu.memory_space<vmem>>, vector<16x16xf32>
    %cst_23 = arith.constant dense<0.000000e+00> : vector<16x128xf32>
    %30 = tpu.matmul %29, %28, %cst_23 {dimension_numbers = #tpu.dot_dimension_numbers<[1], [0], [0], [1], [0, 0, 1, 1], [], []>} : vector<16x16xf32>, vector<16x128xf32>, vector<16x128xf32> -> vector<16x128xf32>
    %c1_24 = arith.constant 1 : index
    %c0_25 = arith.constant 0 : index
    %c0_26 = arith.constant 0 : index
    %31 = vector.load %arg3[%c1_24, %c0_25, %c0_26] : memref<2x1x128xf32, #tpu.memory_space<vmem>>, vector<1x1x128xf32>
    %32 = vector.shape_cast %31 : vector<1x1x128xf32> to vector<1x128xf32>
    %33 = vector.broadcast %32 : vector<1x128xf32> to vector<16x128xf32>
    %34 = arith.addf %30, %33 : vector<16x128xf32>
    %c1_27 = arith.constant 1 : index
    %c0_28 = arith.constant 0 : index
    %c0_29 = arith.constant 0 : index
    %35 = vector.load %arg5[%c1_27, %c0_28, %c0_29] : memref<2x16x128xi32, #tpu.memory_space<vmem>>, vector<1x16x128xi32>
    %36 = vector.shape_cast %35 : vector<1x16x128xi32> to vector<16x128xi32>
    %c15099494_i32_30 = arith.constant 15099494 : i32
    %37 = vector.broadcast %c15099494_i32_30 : i32 to vector<16x128xi32>
    %38 = arith.cmpi sge, %36, %37 : vector<16x128xi32>
    %c1_31 = arith.constant 1 : index
    %39 = memref.load %arg4[%c1_31] : memref<2xf32, #tpu.memory_space<smem>>
    %cst_32 = arith.constant 0.000000e+00 : f32
    %40 = vector.broadcast %cst_32 : f32 to vector<16x128xf32>
    %41 = arith.cmpf ogt, %34, %40 : vector<16x128xf32>
    %cst_33 = arith.constant 1.000000e+01 : f32
    %42 = arith.mulf %cst_33, %39 : f32
    %cst_34 = arith.constant 1.000000e+01 : f32
    %43 = vector.broadcast %cst_34 : f32 to vector<16x128xf32>
    %44 = vector.broadcast %42 : f32 to vector<16x128xf32>
    %45 = arith.select %41, %43, %44 : vector<16x128xi1>, vector<16x128xf32>
    %cst_35 = arith.constant 0.000000e+00 : f32
    %46 = vector.broadcast %cst_35 : f32 to vector<16x128xf32>
    %47 = arith.select %38, %45, %46 : vector<16x128xi1>, vector<16x128xf32>
    %48 = arith.mulf %34, %47 : vector<16x128xf32>
    %c0_36 = arith.constant 0 : index
    %c0_37 = arith.constant 0 : index
    %49 = vector.load %arg6[%c0_36, %c0_37] : memref<16x128xf32, #tpu.memory_space<vmem>>, vector<16x128xf32>
    tpu.vector_store %arg6[%c0_36, %c0_37], %48 {strides = array<i32>} : memref<16x128xf32, #tpu.memory_space<vmem>>, vector<16x128xf32>,
    return
  }
}

</mosaic_0001>

<llo_original>
// kernel: tpu_custom_call.1
$region0: #{tpu_custom_call.1}
  #allocation0 [shape = 'u32[]', space=smem, size = 0x4, offset = 0x4, fixed_abs, tag = 'smem constant byte address 0x4 - core index']
  #allocation1 [shape = 'u32[144,128]{1,0:T(1,128)}', space=vmem, size = 0x12000, scoped, tag = 'internal scratch']
  %s0 = inlined_call_operand.hbm [shape: f32[16,128], index: 0, kind: input, shape index: {}]
  %s1 = inlined_call_operand.hbm [shape: f32[16,16], index: 1, kind: input, shape index: {}]
  %s2 = inlined_call_operand.hbm [shape: bf16[2,128,128], index: 2, kind: input, shape index: {}]
  %s3 = inlined_call_operand.vmem [shape: f32[2,1,128], index: 3, kind: input, shape index: {}]
  %s4 = inlined_call_operand.vmem [shape: f32[2], index: 4, kind: input, shape index: {}]
  %s5 = inlined_call_operand.hbm [shape: s32[2,16,128], index: 5, kind: input, shape index: {}]
  %s6 = inlined_call_operand.hbm [shape: f32[16,128], index: 6, kind: output, shape index: {}]
  %s7 = sld [smem:[#allocation0]]
  $region54: #{tpu_custom_call.1} parent=0
    _
  %s9 = ssub.s32 1, %s7
  %s10 = scalar_select 0, %s9, %s7
  $region1: #{tpu_custom_call.1} parent=0
    #allocation2 [shape = 'u8[8192]{0}', space=vmem, size = 0x2000, scoped, tag = 'input window, operand 0, single buffered']
    #allocation3 [shape = 's32[1]{0}', space=sflag, size = 0x4, scoped, tag = 'scoped memory for tpu_custom_call.1']
    #allocation4 [shape = 's32[1]{0}', space=sflag, size = 0x4, scoped, tag = 'scoped memory for tpu_custom_call.1']
    #allocation5 [shape = 's32[1]{0}', space=sflag, size = 0x4, scoped, tag = 'scoped memory for tpu_custom_call.1']
    #allocation6 [shape = 'u8[8192]{0}', space=vmem, size = 0x2000, scoped, tag = 'input window, operand 1, single buffered']
    #allocation7 [shape = 's32[1]{0}', space=sflag, size = 0x4, scoped, tag = 'scoped memory for tpu_custom_call.1']
    #allocation8 [shape = 'u8[65536]{0}', space=vmem, size = 0x10000, scoped, tag = 'input window, operand 2, single buffered']
    #allocation9 [shape = 'u8[512]{0}', space=smem, size = 0x200, scoped, tag = 'input window, operand 4, single buffered']
    #allocation10 [shape = 'u8[16384]{0}', space=vmem, size = 0x4000, scoped, tag = 'input window, operand 5, single buffered']
    #allocation11 [shape = 's32[1]{0}', space=sflag, size = 0x4, scoped, tag = 'scoped memory for tpu_custom_call.1']
    #allocation12 [shape = 'u8[8192]{0}', space=vmem, size = 0x2000, scoped, tag = 'output window, operand 0, single buffered']
    %11 = vsyncpa [#allocation3], 0
    %12 = vsyncpa [#allocation7], 0
    %13 = vsyncpa [#allocation5], 0
    %14 = vsyncpa [#allocation11], 0
    %15 = vsyncpa [#allocation4], 0
    // Predicated region
    $region2: #{tpu_custom_call.1} parent=1 // pred_check
      _
    $region3: #{tpu_custom_call.1} parent=1 // pred_check_branch
      %17 = sbr.rel (0) target = $region5
    $region4: #{tpu_custom_call.1} parent=1 // pred_region
      %s19 = ssub.s32 256, 256
      %20 = vsyncadd [#allocation3], %s19
      %s21 = sshll.u32 [#allocation2], 4
      %s22 = int_to_ptr.vmem [resolvable:$true] %s21
      %27 = dma.hbm_to_vmem [thread:$0]  %s0, 256, %s22, [#allocation3], 128, 128, 8
    $region5: #{tpu_custom_call.1} parent=1 // pred_fallthru
      _
    // Predicated region
    $region6: #{tpu_custom_call.1} parent=1 // pred_check
      _
    $region7: #{tpu_custom_call.1} parent=1 // pred_check_branch
      %29 = sbr.rel (0) target = $region9
    $region8: #{tpu_custom_call.1} parent=1 // pred_region
      %s31 = ssub.s32 256, 256
      %32 = vsyncadd [#allocation7], %s31
      %s33 = sshll.u32 [#allocation6], 4
      %s34 = int_to_ptr.vmem [resolvable:$true] %s33
      %39 = dma.hbm_to_vmem [thread:$0]  %s1, 256, %s34, [#allocation7], 128, 128, 8
    $region9: #{tpu_custom_call.1} parent=1 // pred_fallthru
      _
    // Predicated region
    $region10: #{tpu_custom_call.1} parent=1 // pred_check
      _
    $region11: #{tpu_custom_call.1} parent=1 // pred_check_branch
      %41 = sbr.rel (0) target = $region13
    $region12: #{tpu_custom_call.1} parent=1 // pred_region
      %s43 = ssub.s32 2048, 2048
      %44 = vsyncadd [#allocation7], %s43
      %s45 = sshll.u32 [#allocation8], 4
      %s46 = int_to_ptr.vmem [resolvable:$true] %s45
      %51 = dma.hbm_to_vmem [thread:$0]  %s2, 2048, %s46, [#allocation7], 64, 64, 4
    $region13: #{tpu_custom_call.1} parent=1 // pred_fallthru
      _
    // Predicated region
    $region14: #{tpu_custom_call.1} parent=1 // pred_check
      _
    $region15: #{tpu_custom_call.1} parent=1 // pred_check_branch
      %53 = sbr.rel (0) target = $region17
    $region16: #{tpu_custom_call.1} parent=1 // pred_region
      _
    $region17: #{tpu_custom_call.1} parent=1 // pred_fallthru
      _
    // Predicated region
    $region18: #{tpu_custom_call.1} parent=1 // pred_check
      _
    $region19: #{tpu_custom_call.1} parent=1 // pred_check_branch
      %55 = sbr.rel (0) target = $region21
    $region20: #{tpu_custom_call.1} parent=1 // pred_region
      %s57 = ssub.s32 16, 16
      %58 = vsyncadd [#allocation5], %s57
      %s60 = sshll.u32 %s4, 4
      %s61 = int_to_ptr.vmem [resolvable:$true] %s60
      %63 = dma.vmem_to_smem %s61, 16, [#allocation9], [#allocation5]
    $region21: #{tpu_custom_call.1} parent=1 // pred_fallthru
      _
    // Predicated region
    $region22: #{tpu_custom_call.1} parent=1 // pred_check
      _
    $region23: #{tpu_custom_call.1} parent=1 // pred_check_branch
      %65 = sbr.rel (0) target = $region25
    $region24: #{tpu_custom_call.1} parent=1 // pred_region
      %s67 = ssub.s32 512, 512
      %68 = vsyncadd [#allocation11], %s67
      %s69 = sshll.u32 [#allocation10], 4
      %s70 = int_to_ptr.vmem [resolvable:$true] %s69
      %75 = dma.hbm_to_vmem [thread:$0]  %s5, 512, %s70, [#allocation11], 128, 128, 8
    $region25: #{tpu_custom_call.1} parent=1 // pred_fallthru
      _
    // Predicated region
    $region26: #{tpu_custom_call.1} parent=1 // pred_check
      _
    $region27: #{tpu_custom_call.1} parent=1 // pred_check_branch
      %77 = sbr.rel (0) target = $region29
    $region28: #{tpu_custom_call.1} parent=1 // pred_region
      %78 = dma.done [#allocation3], 256
    $region29: #{tpu_custom_call.1} parent=1 // pred_fallthru
      _
    // Predicated region
    $region30: #{tpu_custom_call.1} parent=1 // pred_check
      _
    $region31: #{tpu_custom_call.1} parent=1 // pred_check_branch
      %80 = sbr.rel (0) target = $region33
    $region32: #{tpu_custom_call.1} parent=1 // pred_region
      %81 = dma.done [#allocation7], 256
    $region33: #{tpu_custom_call.1} parent=1 // pred_fallthru
      _
    // Predicated region
    $region34: #{tpu_custom_call.1} parent=1 // pred_check
      _
    $region35: #{tpu_custom_call.1} parent=1 // pred_check_branch
      %83 = sbr.rel (0) target = $region37
    $region36: #{tpu_custom_call.1} parent=1 // pred_region
      %84 = dma.done [#allocation7], 2048
    $region37: #{tpu_custom_call.1} parent=1 // pred_fallthru
      _
    // Predicated region
    $region38: #{tpu_custom_call.1} parent=1 // pred_check
      _
    $region39: #{tpu_custom_call.1} parent=1 // pred_check_branch
      %86 = sbr.rel (0) target = $region41
    $region40: #{tpu_custom_call.1} parent=1 // pred_region
      %87 = dma.done [#allocation5], 16
    $region41: #{tpu_custom_call.1} parent=1 // pred_fallthru
      _
    // Predicated region
    $region42: #{tpu_custom_call.1} parent=1 // pred_check
      _
    $region43: #{tpu_custom_call.1} parent=1 // pred_check_branch
      %89 = sbr.rel (0) target = $region45
    $region44: #{tpu_custom_call.1} parent=1 // pred_region
      %90 = dma.done [#allocation11], 512
    $region45: #{tpu_custom_call.1} parent=1 // pred_fallthru
      _
    %91 = sfence
    %v93 = vld [vmem:[#allocation2] sm:$0xff]
    %v94 = vld [vmem:[#allocation2 + $0x8] sm:$0xff]
    %v95 = vpack.c.bf16 %v94, %v93
    %v96 = vld [vmem:[#allocation8] sm:$0xf]
    %v97 = vld [vmem:[#allocation8 + $0x4] sm:$0xf]
    %v98 = vld [vmem:[#allocation8 + $0x8] sm:$0xf]
    %v99 = vld [vmem:[#allocation8 + $0xc] sm:$0xf]
    %v100 = vld [vmem:[#allocation8 + $0x10] sm:$0xf]
    %v101 = vld [vmem:[#allocation8 + $0x14] sm:$0xf]
    %v102 = vld [vmem:[#allocation8 + $0x18] sm:$0xf]
    %v103 = vld [vmem:[#allocation8 + $0x1c] sm:$0xf]
    %v104 = vld [vmem:[#allocation8 + $0x20] sm:$0xf]
    %v105 = vld [vmem:[#allocation8 + $0x24] sm:$0xf]
    %v106 = vld [vmem:[#allocation8 + $0x28] sm:$0xf]
    %v107 = vld [vmem:[#allocation8 + $0x2c] sm:$0xf]
    %v108 = vld [vmem:[#allocation8 + $0x30] sm:$0xf]
    %v109 = vld [vmem:[#allocation8 + $0x34] sm:$0xf]
    %v110 = vld [vmem:[#allocation8 + $0x38] sm:$0xf]
    %v111 = vld [vmem:[#allocation8 + $0x3c] sm:$0xf]
    %v128 = vunpack.c.l.b16 %v96
    %v129 = vunpack.c.l.b16 %v97
    %v130 = vunpack.c.l.b16 %v98
    %v131 = vunpack.c.l.b16 %v99
    %v132 = vunpack.c.l.b16 %v100
    %v133 = vunpack.c.l.b16 %v101
    %v134 = vunpack.c.l.b16 %v102
    %v135 = vunpack.c.l.b16 %v103
    %v136 = vunpack.c.l.b16 %v104
    %v137 = vunpack.c.l.b16 %v105
    %v138 = vunpack.c.l.b16 %v106
    %v139 = vunpack.c.l.b16 %v107
    %v140 = vunpack.c.l.b16 %v108
    %v141 = vunpack.c.l.b16 %v109
    %v142 = vunpack.c.l.b16 %v110
    %v143 = vunpack.c.l.b16 %v111
    %v144 = vpack.c.b16 %v129, %v128
    %v145 = vpack.c.b16 %v131, %v130
    %v146 = vpack.c.b16 %v133, %v132
    %v147 = vpack.c.b16 %v135, %v134
    %v148 = vpack.c.b16 %v137, %v136
    %v149 = vpack.c.b16 %v139, %v138
    %v150 = vpack.c.b16 %v141, %v140
    %v151 = vpack.c.b16 %v143, %v142
    %160 = vmatprep.subr.bf16.mxu0 0
    %161 = vmatpush1.bf16.msra.mxu0 %v151
    %162 = vmatprep.subr.bf16.mxu0 0
    %163 = vmatpush1.bf16.msra.mxu0 %v150
    %164 = vmatprep.subr.bf16.mxu0 0
    %165 = vmatpush1.bf16.msra.mxu0 %v149
    %166 = vmatprep.subr.bf16.mxu0 0
    %167 = vmatpush1.bf16.msra.mxu0 %v148
    %168 = vmatprep.subr.bf16.mxu0 0
    %169 = vmatpush1.bf16.msra.mxu0 %v147
    %170 = vmatprep.subr.bf16.mxu0 0
    %171 = vmatpush1.bf16.msra.mxu0 %v146
    %172 = vmatprep.subr.bf16.mxu0 0
    %173 = vmatpush1.bf16.msra.mxu0 %v145
    %174 = vmatprep.subr.bf16.mxu0 0
    %175 = vmatpush1.bf16.msra.mxu0 %v144
    %176 = vmatprep.subr.bf16.mxu0 0
    %177 = vmatpush2.bf16.msra.mxu0 0
    %178 = vmatprep.subr.bf16.mxu0 0
    %179 = vmatpush2.bf16.msra.mxu0 0
    %180 = vmatprep.subr.bf16.mxu0 0
    %181 = vmatpush2.bf16.msra.mxu0 0
    %182 = vmatprep.subr.bf16.mxu0 0
    %183 = vmatpush2.bf16.msra.mxu0 0
    %184 = vmatprep.subr.bf16.mxu0 0
    %185 = vmatpush2.bf16.msra.mxu0 0
    %186 = vmatprep.subr.bf16.mxu0 0
    %187 = vmatpush2.bf16.msra.mxu0 0
    %188 = vmatprep.subr.bf16.mxu0 0
    %189 = vmatpush2.bf16.msra.mxu0 0
    %190 = vmatprep.subr.bf16.mxu0 0
    %191 = vmatpush2.bf16.msra.mxu0 0
    %192 = vmatprep.mubr.bf16.mxu0 0
    %193 = vmatmul.mubr.bf16.gmra.mxu0 %v95
    %v194 = vpop.f32.mrf.mxu0
    %v195 = vadd.f32 0.0, %v194
    %v196 = vpop.f32.mrf.mxu0
    %v197 = vpop.f32.mrf.mxu0
    %v198 = vadd.f32 0.0, %v197
    %v199 = vpop.f32.mrf.mxu0
    %200 = vdwg.mxu0
    %v201 = vld [vmem:[#allocation6] sm:$0xff]
    %v202 = vld [vmem:[#allocation6 + $0x8] sm:$0xff]
    %v203 = vld [vmem:[%s3] sm:$0x1]
    %v205 = vlaneseq
    %v206 = vshrl.u32 %v205, 7
    %v207 = vsub.s32 0, %v206
    %v208 = vrot.slane %v203, %v207
    %vm210 = vcmask 130048
    %v212 = vsel %vm210, %v201, 0
    %v215 = vsel %vm210, %v202, 0
    %217 = vmatprep.subr.mxu0 0.0
    %218 = vmatpush1.msra.mxu0 0.0
    %219 = vmatprep.subr.mxu0 0.0
    %220 = vmatpush1.msra.mxu0 0.0
    %221 = vmatprep.subr.mxu0 0.0
    %222 = vmatpush1.msra.mxu0 0.0
    %223 = vmatprep.subr.mxu0 0.0
    %224 = vmatpush1.msra.mxu0 0.0
    %225 = vmatprep.subr.mxu0 0.0
    %226 = vmatpush1.msra.mxu0 0.0
    %227 = vmatprep.subr.mxu0 0.0
    %228 = vmatpush1.msra.mxu0 0.0
    %229 = vmatprep.subr.mxu0 0.0
    %230 = vmatpush1.msra.mxu0 0.0
    %231 = vmatprep.subr.mxu0 0.0
    %232 = vmatpush1.msra.mxu0 0.0
    %233 = vmatprep.subr.mxu0 0.0
    %234 = vmatpush1.msra.mxu0 0.0
    %235 = vmatprep.subr.mxu0 0.0
    %236 = vmatpush1.msra.mxu0 0.0
    %237 = vmatprep.subr.mxu0 0.0
    %238 = vmatpush1.msra.mxu0 0.0
    %239 = vmatprep.subr.mxu0 0.0
    %240 = vmatpush1.msra.mxu0 0.0
    %241 = vmatprep.subr.mxu0 0.0
    %242 = vmatpush1.msra.mxu0 0.0
    %243 = vmatprep.subr.mxu0 0.0
    %244 = vmatpush1.msra.mxu0 0.0
    %245 = vmatprep.subr.mxu0 0.0
    %246 = vmatpush1.msra.mxu0 %v198
    %247 = vmatprep.subr.mxu0 0.0
    %248 = vmatpush1.msra.mxu0 %v195
    %249 = vmatprep.subr.mxu0 0.0
    %250 = vmatpush2.msra.mxu0 0.0
    %251 = vmatprep.subr.mxu0 0.0
    %252 = vmatpush2.msra.mxu0 0.0
    %253 = vmatprep.subr.mxu0 0.0
    %254 = vmatpush2.msra.mxu0 0.0
    %255 = vmatprep.subr.mxu0 0.0
    %256 = vmatpush2.msra.mxu0 0.0
    %257 = vmatprep.subr.mxu0 0.0
    %258 = vmatpush2.msra.mxu0 0.0
    %259 = vmatprep.subr.mxu0 0.0
    %260 = vmatpush2.msra.mxu0 0.0
    %261 = vmatprep.subr.mxu0 0.0
    %262 = vmatpush2.msra.mxu0 0.0
    %263 = vmatprep.subr.mxu0 0.0
    %264 = vmatpush2.msra.mxu0 0.0
    %265 = vmatprep.subr.mxu0 0.0
    %266 = vmatpush2.msra.mxu0 0.0
    %267 = vmatprep.subr.mxu0 0.0
    %268 = vmatpush2.msra.mxu0 0.0
    %269 = vmatprep.subr.mxu0 0.0
    %270 = vmatpush2.msra.mxu0 0.0
    %271 = vmatprep.subr.mxu0 0.0
    %272 = vmatpush2.msra.mxu0 0.0
    %273 = vmatprep.subr.mxu0 0.0
    %274 = vmatpush2.msra.mxu0 0.0
    %275 = vmatprep.subr.mxu0 0.0
    %276 = vmatpush2.msra.mxu0 0.0
    %277 = vmatprep.subr.mxu0 0.0
    %278 = vmatpush2.msra.mxu0 0.0
    %279 = vmatprep.subr.mxu0 0.0
    %280 = vmatpush2.msra.mxu0 0.0
    %281 = vmatprep.mubr.f32.mxu0 0.0
    %282 = vmatmul.mubr.f32.gmra.mxu0 %v212
    %v283 = vpop.f32.mrf.mxu0
    %v284 = vadd.f32 %v208, %v283
    %v285 = vpop.f32.mrf.mxu0
    %286 = vmatprep.mubr.f32.mxu0 0.0
    %287 = vmatmul.mubr.f32.gmra.mxu0 %v215
    %v288 = vpop.f32.mrf.mxu0
    %v289 = vadd.f32 %v208, %v288
    %v290 = vpop.f32.mrf.mxu0
    %291 = vdwg.mxu0
    %v292 = vld [vmem:[#allocation10] sm:$0xff]
    %v293 = vld [vmem:[#allocation10 + $0x8] sm:$0xff]
    %vm294 = vcmp.ge.s32.totalorder %v292, 15099494
    %vm295 = vcmp.ge.s32.totalorder %v293, 15099494
    %s296 = sld [smem:[#allocation9]]
    %vm297 = vcmp.gt.f32.partialorder %v284, 0.0
    %vm298 = vcmp.gt.f32.partialorder %v289, 0.0
    %s299 = smul.f32 %s296, 10.0
    %v300 = vstv %s299
    %v301 = vsel %vm297, 10.0, %v300
    %v302 = vsel %vm298, 10.0, %v300
    %v303 = vsel %vm294, %v301, 0.0
    %v304 = vsel %vm295, %v302, 0.0
    %v305 = vmul.f32 %v284, %v303
    %v306 = vmul.f32 %v289, %v304
    %v307 = vpack.c.bf16 %v306, %v305
    %s308 = scalar_lea.vmem [#allocation8], 64
    %v309 = vld [vmem:[%s308] sm:$0xf]
    %v310 = vld [vmem:[%s308 + $0x4] sm:$0xf]
    %v311 = vld [vmem:[%s308 + $0x8] sm:$0xf]
    %v312 = vld [vmem:[%s308 + $0xc] sm:$0xf]
    %v313 = vld [vmem:[%s308 + $0x10] sm:$0xf]
    %v314 = vld [vmem:[%s308 + $0x14] sm:$0xf]
    %v315 = vld [vmem:[%s308 + $0x18] sm:$0xf]
    %v316 = vld [vmem:[%s308 + $0x1c] sm:$0xf]
    %v317 = vld [vmem:[%s308 + $0x20] sm:$0xf]
    %v318 = vld [vmem:[%s308 + $0x24] sm:$0xf]
    %v319 = vld [vmem:[%s308 + $0x28] sm:$0xf]
    %v320 = vld [vmem:[%s308 + $0x2c] sm:$0xf]
    %v321 = vld [vmem:[%s308 + $0x30] sm:$0xf]
    %v322 = vld [vmem:[%s308 + $0x34] sm:$0xf]
    %v323 = vld [vmem:[%s308 + $0x38] sm:$0xf]
    %v324 = vld [vmem:[%s308 + $0x3c] sm:$0xf]
    %v341 = vunpack.c.l.b16 %v309
    %v342 = vunpack.c.l.b16 %v310
    %v343 = vunpack.c.l.b16 %v311
    %v344 = vunpack.c.l.b16 %v312
    %v345 = vunpack.c.l.b16 %v313
    %v346 = vunpack.c.l.b16 %v314
    %v347 = vunpack.c.l.b16 %v315
    %v348 = vunpack.c.l.b16 %v316
    %v349 = vunpack.c.l.b16 %v317
    %v350 = vunpack.c.l.b16 %v318
    %v351 = vunpack.c.l.b16 %v319
    %v352 = vunpack.c.l.b16 %v320
    %v353 = vunpack.c.l.b16 %v321
    %v354 = vunpack.c.l.b16 %v322
    %v355 = vunpack.c.l.b16 %v323
    %v356 = vunpack.c.l.b16 %v324
    %v357 = vpack.c.b16 %v342, %v341
    %v358 = vpack.c.b16 %v344, %v343
    %v359 = vpack.c.b16 %v346, %v345
    %v360 = vpack.c.b16 %v348, %v347
    %v361 = vpack.c.b16 %v350, %v349
    %v362 = vpack.c.b16 %v352, %v351
    %v363 = vpack.c.b16 %v354, %v353
    %v364 = vpack.c.b16 %v356, %v355
    %373 = vmatprep.subr.bf16.mxu0 0
    %374 = vmatpush1.bf16.msra.mxu0 %v364
    %375 = vmatprep.subr.bf16.mxu0 0
    %376 = vmatpush1.bf16.msra.mxu0 %v363
    %377 = vmatprep.subr.bf16.mxu0 0
    %378 = vmatpush1.bf16.msra.mxu0 %v362
    %379 = vmatprep.subr.bf16.mxu0 0
    %380 = vmatpush1.bf16.msra.mxu0 %v361
    %381 = vmatprep.subr.bf16.mxu0 0
    %382 = vmatpush1.bf16.msra.mxu0 %v360
    %383 = vmatprep.subr.bf16.mxu0 0
    %384 = vmatpush1.bf16.msra.mxu0 %v359
    %385 = vmatprep.subr.bf16.mxu0 0
    %386 = vmatpush1.bf16.msra.mxu0 %v358
    %387 = vmatprep.subr.bf16.mxu0 0
    %388 = vmatpush1.bf16.msra.mxu0 %v357
    %389 = vmatprep.subr.bf16.mxu0 0
    %390 = vmatpush2.bf16.msra.mxu0 0
    %391 = vmatprep.subr.bf16.mxu0 0
    %392 = vmatpush2.bf16.msra.mxu0 0
    %393 = vmatprep.subr.bf16.mxu0 0
    %394 = vmatpush2.bf16.msra.mxu0 0
    %395 = vmatprep.subr.bf16.mxu0 0
    %396 = vmatpush2.bf16.msra.mxu0 0
    %397 = vmatprep.subr.bf16.mxu0 0
    %398 = vmatpush2.bf16.msra.mxu0 0
    %399 = vmatprep.subr.bf16.mxu0 0
    %400 = vmatpush2.bf16.msra.mxu0 0
    %401 = vmatprep.subr.bf16.mxu0 0
    %402 = vmatpush2.bf16.msra.mxu0 0
    %403 = vmatprep.subr.bf16.mxu0 0
    %404 = vmatpush2.bf16.msra.mxu0 0
    %405 = vmatprep.mubr.bf16.mxu0 0
    %406 = vmatmul.mubr.bf16.gmra.mxu0 %v307
    %v407 = vpop.f32.mrf.mxu0
    %v408 = vadd.f32 0.0, %v407
    %v409 = vpop.f32.mrf.mxu0
    %v410 = vpop.f32.mrf.mxu0
    %v411 = vadd.f32 0.0, %v410
    %v412 = vpop.f32.mrf.mxu0
    %413 = vdwg.mxu0
    %s414 = scalar_lea.vmem %s3, 1
    %v415 = vld [vmem:[%s414] sm:$0x1]
    %v417 = vlaneseq
    %v418 = vshrl.u32 %v417, 7
    %v419 = vsub.s32 0, %v418
    %v420 = vrot.slane %v415, %v419
    %422 = vmatprep.subr.mxu0 0.0
    %423 = vmatpush1.msra.mxu0 0.0
    %424 = vmatprep.subr.mxu0 0.0
    %425 = vmatpush1.msra.mxu0 0.0
    %426 = vmatprep.subr.mxu0 0.0
    %427 = vmatpush1.msra.mxu0 0.0
    %428 = vmatprep.subr.mxu0 0.0
    %429 = vmatpush1.msra.mxu0 0.0
    %430 = vmatprep.subr.mxu0 0.0
    %431 = vmatpush1.msra.mxu0 0.0
    %432 = vmatprep.subr.mxu0 0.0
    %433 = vmatpush1.msra.mxu0 0.0
    %434 = vmatprep.subr.mxu0 0.0
    %435 = vmatpush1.msra.mxu0 0.0
    %436 = vmatprep.subr.mxu0 0.0
    %437 = vmatpush1.msra.mxu0 0.0
    %438 = vmatprep.subr.mxu0 0.0
    %439 = vmatpush1.msra.mxu0 0.0
    %440 = vmatprep.subr.mxu0 0.0
    %441 = vmatpush1.msra.mxu0 0.0
    %442 = vmatprep.subr.mxu0 0.0
    %443 = vmatpush1.msra.mxu0 0.0
    %444 = vmatprep.subr.mxu0 0.0
    %445 = vmatpush1.msra.mxu0 0.0
    %446 = vmatprep.subr.mxu0 0.0
    %447 = vmatpush1.msra.mxu0 0.0
    %448 = vmatprep.subr.mxu0 0.0
    %449 = vmatpush1.msra.mxu0 0.0
    %450 = vmatprep.subr.mxu0 0.0
    %451 = vmatpush1.msra.mxu0 %v411
    %452 = vmatprep.subr.mxu0 0.0
    %453 = vmatpush1.msra.mxu0 %v408
    %454 = vmatprep.subr.mxu0 0.0
    %455 = vmatpush2.msra.mxu0 0.0
    %456 = vmatprep.subr.mxu0 0.0
    %457 = vmatpush2.msra.mxu0 0.0
    %458 = vmatprep.subr.mxu0 0.0
    %459 = vmatpush2.msra.mxu0 0.0
    %460 = vmatprep.subr.mxu0 0.0
    %461 = vmatpush2.msra.mxu0 0.0
    %462 = vmatprep.subr.mxu0 0.0
    %463 = vmatpush2.msra.mxu0 0.0
    %464 = vmatprep.subr.mxu0 0.0
    %465 = vmatpush2.msra.mxu0 0.0
    %466 = vmatprep.subr.mxu0 0.0
    %467 = vmatpush2.msra.mxu0 0.0
    %468 = vmatprep.subr.mxu0 0.0
    %469 = vmatpush2.msra.mxu0 0.0
    %470 = vmatprep.subr.mxu0 0.0
    %471 = vmatpush2.msra.mxu0 0.0
    %472 = vmatprep.subr.mxu0 0.0
    %473 = vmatpush2.msra.mxu0 0.0
    %474 = vmatprep.subr.mxu0 0.0
    %475 = vmatpush2.msra.mxu0 0.0
    %476 = vmatprep.subr.mxu0 0.0
    %477 = vmatpush2.msra.mxu0 0.0
    %478 = vmatprep.subr.mxu0 0.0
    %479 = vmatpush2.msra.mxu0 0.0
    %480 = vmatprep.subr.mxu0 0.0
    %481 = vmatpush2.msra.mxu0 0.0
    %482 = vmatprep.subr.mxu0 0.0
    %483 = vmatpush2.msra.mxu0 0.0
    %484 = vmatprep.subr.mxu0 0.0
    %485 = vmatpush2.msra.mxu0 0.0
    %486 = vmatprep.mubr.f32.mxu0 0.0
    %487 = vmatmul.mubr.f32.gmra.mxu0 %v212
    %v488 = vpop.f32.mrf.mxu0
    %v489 = vadd.f32 %v420, %v488
    %v490 = vpop.f32.mrf.mxu0
    %491 = vmatprep.mubr.f32.mxu0 0.0
    %492 = vmatmul.mubr.f32.gmra.mxu0 %v215
    %v493 = vpop.f32.mrf.mxu0
    %v494 = vadd.f32 %v420, %v493
    %v495 = vpop.f32.mrf.mxu0
    %496 = vdwg.mxu0
    %s497 = scalar_lea.vmem [#allocation10], 16
    %v498 = vld [vmem:[%s497] sm:$0xff]
    %v499 = vld [vmem:[%s497 + $0x8] sm:$0xff]
    %vm500 = vcmp.ge.s32.totalorder %v498, 15099494
    %vm501 = vcmp.ge.s32.totalorder %v499, 15099494
    %s502 = sld [smem:[#allocation9 + $0x1]]
    %vm503 = vcmp.gt.f32.partialorder %v489, 0.0
    %vm504 = vcmp.gt.f32.partialorder %v494, 0.0
    %s505 = smul.f32 %s502, 10.0
    %v506 = vstv %s505
    %v507 = vsel %vm503, 10.0, %v506
    %v508 = vsel %vm504, 10.0, %v506
    %v509 = vsel %vm500, %v507, 0.0
    %v510 = vsel %vm501, %v508, 0.0
    %v511 = vmul.f32 %v489, %v509
    %v512 = vmul.f32 %v494, %v510
    %513 = vst [vmem:[#allocation12] sm:$0xff] %v511
    %514 = vst [vmem:[#allocation12 + $0x8] sm:$0xff] %v512
    // Predicated region
    $region46: #{tpu_custom_call.1} parent=1 // pred_check
      _
    $region47: #{tpu_custom_call.1} parent=1 // pred_check_branch
      %516 = sbr.rel (0) target = $region49
    $region48: #{tpu_custom_call.1} parent=1 // pred_region
      %s518 = ssub.s32 256, 256
      %519 = vsyncadd [#allocation4], %s518
      %s520 = sshll.u32 [#allocation12], 4
      %s521 = int_to_ptr.vmem [resolvable:$true] %s520
      %526 = dma.vmem_to_hbm [thread:$0]  %s521, 256, %s6, [#allocation4], 128, 128, 8
    $region49: #{tpu_custom_call.1} parent=1 // pred_fallthru
      _
    // Predicated region
    $region50: #{tpu_custom_call.1} parent=1 // pred_check
      _
    $region51: #{tpu_custom_call.1} parent=1 // pred_check_branch
      %528 = sbr.rel (0) target = $region53
    $region52: #{tpu_custom_call.1} parent=1 // pred_region
      %529 = dma.done [#allocation4], 256
    $region53: #{tpu_custom_call.1} parent=1 // pred_fallthru
      _
    %530 = vsyncpa [#allocation3], 1
    %531 = vsyncpa [#allocation7], 1
    %532 = vsyncpa [#allocation11], 1
    %533 = vsyncpa [#allocation4], 1
    %534 = vsyncpa [#allocation5], 1

</llo_original>
